<compile_context>
chip_gen: v5e
topology: v5e:2x2
jax: 0.10.0
libtpu: 0.0.40
codegen_flags: <defaults>
</compile_context>

<pallas_src>
import functools

import jax
import jax.numpy as jnp
from jax.experimental import pallas as pl
from jax.experimental.pallas import tpu as pltpu


def dueling_q_kernel(
    x_ref,                     # (TB, S)       bf16
    w1_ref, b1_ref,            # (S, 256)  bf16, (1, 256) f32
    w2_ref, b2_ref,            # (256, 128) bf16, (1, 128) f32
    wh1_ref, bh1_ref,          # fused fc3+head1: (128, 64) bf16, (1, 64) f32
    wh2_ref, bh2_ref,          # fused/padded head2: (64, 128) bf16, (1, 128) f32
    out_ref,                   # (TB, A) f32  -- final Q values
    *,
    action_size: int,
):
    x = x_ref[...]

    # Feature trunk (bf16 MXU operands, f32 accumulation + bias + ReLU).
    h = jnp.dot(x, w1_ref[...], preferred_element_type=jnp.float32) + b1_ref[...]
    h = jnp.maximum(h, 0.0).astype(jnp.bfloat16)
    h = jnp.dot(h, w2_ref[...], preferred_element_type=jnp.float32) + b2_ref[...]
    h = jnp.maximum(h, 0.0).astype(jnp.bfloat16)

    # fc3 is algebraically folded into head layer 1 (no ReLU between them in
    # the PyTorch module); hh = relu(h @ (w3 @ [wv1|wa1]) + (b3 @ [wv1|wa1] + [bv1|ba1])).
    hh = jnp.dot(h, wh1_ref[...], preferred_element_type=jnp.float32) + bh1_ref[...]
    hh = jnp.maximum(hh, 0.0).astype(jnp.bfloat16)

    # Padded head layer 2: lanes [0, A) = advantages, lane A = value, rest = 0.
    q_raw = jnp.dot(hh, wh2_ref[...], preferred_element_type=jnp.float32) + bh2_ref[...]

    v = q_raw[:, action_size:action_size + 1]                     # (TB, 1)
    # Padded lanes are exactly zero, so sum(q_raw) = sum(advantages) + value.
    a_mean = (jnp.sum(q_raw, axis=1, keepdims=True) - v) * (1.0 / action_size)
    adv = q_raw[:, :action_size]                                  # (TB, A)

    out_ref[...] = (v + adv - a_mean).astype(out_ref.dtype)


def _round_up(n, m):
    return ((n + m - 1) // m) * m


def _choose_tiling(batch, max_tile):
    """Pick (tile_rows, padded_rows): minimal padding, cap tile, >=2 tiles when big."""
    rows = _round_up(batch, 16)
    n_tiles = -(-rows // max_tile)
    # Use both v7x TensorCores when the batch is large enough that an extra
    # ~0.35us pipeline step is noise.
    if n_tiles == 1 and rows >= 1024:
        n_tiles = 2
    tb = _round_up(-(-rows // n_tiles), 16)
    return tb, tb * n_tiles


def prepare_params(params, action_size):
    """One-time weight prep: bf16 casts, fc3 folding, fused/padded head weights."""
    wv1, wa1 = params["wv1"], params["wa1"]            # (64, 32) each
    v_hidden = wv1.shape[1]
    wh1_raw = jnp.concatenate([wv1, wa1], axis=1)                       # (64, 64)
    bh1_raw = jnp.concatenate([params["bv1"], params["ba1"]], axis=1)   # (1, 64)

    # Fold fc3 (no ReLU after it) into head layer 1.
    wh1 = params["w3"] @ wh1_raw                                        # (128, 64)
    bh1 = params["b3"] @ wh1_raw + bh1_raw                              # (1, 64)

    head_pad = 128   # lane-dense padded width for the head-2 matmul
    wh2 = jnp.zeros((wh1_raw.shape[1], head_pad), jnp.float32)
    wh2 = wh2.at[:v_hidden, action_size].set(params["wv2"][:, 0])       # value col
    wh2 = wh2.at[v_hidden:, :action_size].set(params["wa2"])            # advantage cols
    bh2 = jnp.zeros((1, head_pad), jnp.float32)
    bh2 = bh2.at[0, action_size].set(params["bv2"][0, 0])
    bh2 = bh2.at[0, :action_size].set(params["ba2"][0])

    bf16 = lambda w: w.astype(jnp.bfloat16)
    return {
        "w1": bf16(params["w1"]), "b1": params["b1"],
        "w2": bf16(params["w2"]), "b2": params["b2"],
        "wh1": bf16(wh1), "bh1": bh1,
        "wh2": bf16(wh2), "bh2": bh2,
    }


@functools.partial(jax.jit, static_argnames=("action_size", "max_batch_tile"))
def dueling_q_forward(x, prepped, *, action_size, max_batch_tile=4096):
    """x: (B, state_size) float32. Returns (B, action_size) float32 Q-values."""
    batch, state_size = x.shape
    tb, b_pad = _choose_tiling(batch, max_batch_tile)

    x_p = jnp.zeros((b_pad, state_size), jnp.bfloat16).at[:batch].set(
        x.astype(jnp.bfloat16)
    )
    grid = (b_pad // tb,)

    args = (
        x_p,
        prepped["w1"], prepped["b1"],
        prepped["w2"], prepped["b2"],
        prepped["wh1"], prepped["bh1"],
        prepped["wh2"], prepped["bh2"],
    )

    def const_spec(a):
        return pl.BlockSpec(a.shape, lambda i: (0, 0))

    in_specs = [pl.BlockSpec((tb, state_size), lambda i: (i, 0))]
    in_specs += [const_spec(a) for a in args[1:]]

    out = pl.pallas_call(
        functools.partial(dueling_q_kernel, action_size=action_size),
        out_shape=jax.ShapeDtypeStruct((b_pad, action_size), jnp.float32),
        grid=grid,
        in_specs=in_specs,
        out_specs=pl.BlockSpec((tb, action_size), lambda i: (i, 0)),
        compiler_params=pltpu.CompilerParams(
            dimension_semantics=("parallel",),
            vmem_limit_bytes=48 * 1024 * 1024,
        ),
    )(*args)

    return out[:batch]   # fuses under this jit; no separate HBM round-trip


def init_params(key, state_size, action_size):
    """Deterministic synthetic init mimicking PyTorch Linear's U(-1/sqrt(fan_in), +)."""
    dims = [
        ("w1", "b1", state_size, 256),
        ("w2", "b2", 256, 128),
        ("w3", "b3", 128, 64),
        ("wv1", "bv1", 64, 32),
        ("wv2", "bv2", 32, 1),
        ("wa1", "ba1", 64, 32),
        ("wa2", "ba2", 32, action_size),
    ]
    params = {}
    keys = jax.random.split(key, 2 * len(dims))
    for i, (wn, bn, fan_in, fan_out) in enumerate(dims):
        bound = 1.0 / jnp.sqrt(float(fan_in))
        params[wn] = jax.random.uniform(
            keys[2 * i], (fan_in, fan_out), jnp.float32, -bound, bound
        )
        params[bn] = jax.random.uniform(
            keys[2 * i + 1], (1, fan_out), jnp.float32, -bound, bound
        )
    return params


def reference_forward_bf16(x, prepped, action_size):
    """Pure-JAX reference mirroring the kernel's bf16-operand / f32-accumulate math."""
    bf = jnp.bfloat16

    def mm(a, w):
        return jnp.dot(a.astype(bf), w.astype(bf), preferred_element_type=jnp.float32)

    h = jnp.maximum(mm(x, prepped["w1"]) + prepped["b1"], 0.0)
    h = jnp.maximum(mm(h, prepped["w2"]) + prepped["b2"], 0.0)
    hh = jnp.maximum(mm(h, prepped["wh1"]) + prepped["bh1"], 0.0)
    q_raw = mm(hh, prepped["wh2"]) + prepped["bh2"]
    v = q_raw[:, action_size:action_size + 1]
    adv = q_raw[:, :action_size]
    return v + adv - jnp.mean(adv, axis=1, keepdims=True)


def reference_forward_f32(x, params):
    """Exact PyTorch-module semantics in f32 (unfolded layers)."""
    relu = lambda t: jnp.maximum(t, 0.0)
    h = relu(x @ params["w1"] + params["b1"])
    h = relu(h @ params["w2"] + params["b2"])
    feat = h @ params["w3"] + params["b3"]
    v = relu(feat @ params["wv1"] + params["bv1"]) @ params["wv2"] + params["bv2"]
    a = relu(feat @ params["wa1"] + params["ba1"]) @ params["wa2"] + params["ba2"]
    return v + a - jnp.mean(a, axis=1, keepdims=True)


if __name__ == "__main__":
    state_size = 8
    action_size = 4
    batch = 2

    key = jax.random.PRNGKey(0)
    k_params, k_x = jax.random.split(key)
    params = init_params(k_params, state_size, action_size)
    prepped = prepare_params(params, action_size)
    x = jax.random.normal(k_x, (batch, state_size), dtype=jnp.float32)

    out = dueling_q_forward(x, prepped, action_size=action_size)
    out = jax.block_until_ready(out)
    assert out.shape == (batch, action_size)

    # Mirrored bf16-math reference (tight check of the kernel itself).
    ref_bf16 = reference_forward_bf16(x, prepped, action_size)
    err = jnp.max(jnp.abs(out - ref_bf16))
    assert jnp.allclose(out, ref_bf16, atol=1e-2, rtol=1e-2), f"max abs err {err}"

    # Loose check against exact f32 PyTorch-equivalent math (bf16 operands in
    # the kernel introduce ~1e-2-level deviation from a true f32 forward).
    ref_f32 = reference_forward_f32(x, params)
    err32 = jnp.max(jnp.abs(out - ref_f32))
    assert jnp.allclose(out, ref_f32, atol=5e-2, rtol=5e-2), f"max abs err {err32}"

    print("KERNEL_OK")
</pallas_src>

<mosaic_0001>
module attributes {stable_mosaic.version = 11 : i64} {
  func.func @dueling_q_kernel(%arg0: i32, %arg1: memref<16x8xbf16, #tpu.memory_space<vmem>>, %arg2: memref<8x256xbf16, #tpu.memory_space<vmem>>, %arg3: memref<1x256xf32, #tpu.memory_space<vmem>>, %arg4: memref<256x128xbf16, #tpu.memory_space<vmem>>, %arg5: memref<1x128xf32, #tpu.memory_space<vmem>>, %arg6: memref<128x64xbf16, #tpu.memory_space<vmem>>, %arg7: memref<1x64xf32, #tpu.memory_space<vmem>>, %arg8: memref<64x128xbf16, #tpu.memory_space<vmem>>, %arg9: memref<1x128xf32, #tpu.memory_space<vmem>>, %arg10: memref<16x4xf32, #tpu.memory_space<vmem>>) attributes {dimension_semantics = [#tpu.dimension_semantics<parallel>], iteration_bounds = array<i64: 1>, scalar_prefetch = 0 : i64, scratch_operands = 0 : i64, tpu.core_type = #tpu.core_type<tc>, window_params = [{transform_indices = @transform_0, window_bounds = array<i64: 16, 8>}, {pipeline_mode = #tpu.pipeline_mode<synchronous>, transform_indices = @transform_1, window_bounds = array<i64: 8, 256>}, {pipeline_mode = #tpu.pipeline_mode<synchronous>, transform_indices = @transform_2, window_bounds = array<i64: 1, 256>}, {pipeline_mode = #tpu.pipeline_mode<synchronous>, transform_indices = @transform_3, window_bounds = array<i64: 256, 128>}, {pipeline_mode = #tpu.pipeline_mode<synchronous>, transform_indices = @transform_4, window_bounds = array<i64: 1, 128>}, {pipeline_mode = #tpu.pipeline_mode<synchronous>, transform_indices = @transform_5, window_bounds = array<i64: 128, 64>}, {pipeline_mode = #tpu.pipeline_mode<synchronous>, transform_indices = @transform_6, window_bounds = array<i64: 1, 64>}, {pipeline_mode = #tpu.pipeline_mode<synchronous>, transform_indices = @transform_7, window_bounds = array<i64: 64, 128>}, {pipeline_mode = #tpu.pipeline_mode<synchronous>, transform_indices = @transform_8, window_bounds = array<i64: 1, 128>}, {transform_indices = @transform_9, window_bounds = array<i64: 16, 4>}]} {
    %c0 = arith.constant 0 : index
    %c0_0 = arith.constant 0 : index
    %0 = vector.load %arg1[%c0, %c0_0] : memref<16x8xbf16, #tpu.memory_space<vmem>>, vector<16x8xbf16>
    %c0_1 = arith.constant 0 : index
    %c0_2 = arith.constant 0 : index
    %1 = vector.load %arg2[%c0_1, %c0_2] : memref<8x256xbf16, #tpu.memory_space<vmem>>, vector<8x256xbf16>
    %cst = arith.constant dense<0.000000e+00> : vector<16x256xf32>
    %2 = tpu.matmul %0, %1, %cst {dimension_numbers = #tpu.dot_dimension_numbers<[1], [0], [0], [1], [0, 0, 1, 1], [], []>} : vector<16x8xbf16>, vector<8x256xbf16>, vector<16x256xf32> -> vector<16x256xf32>
    %c0_3 = arith.constant 0 : index
    %c0_4 = arith.constant 0 : index
    %3 = vector.load %arg3[%c0_3, %c0_4] : memref<1x256xf32, #tpu.memory_space<vmem>>, vector<1x256xf32>
    %4 = vector.broadcast %3 : vector<1x256xf32> to vector<16x256xf32>
    %5 = arith.addf %2, %4 : vector<16x256xf32>
    %cst_5 = arith.constant 0.000000e+00 : f32
    %6 = vector.broadcast %cst_5 : f32 to vector<16x256xf32>
    %7 = arith.maximumf %5, %6 : vector<16x256xf32>
    %8 = arith.truncf %7 : vector<16x256xf32> to vector<16x256xbf16>
    %c0_6 = arith.constant 0 : index
    %c0_7 = arith.constant 0 : index
    %9 = vector.load %arg4[%c0_6, %c0_7] : memref<256x128xbf16, #tpu.memory_space<vmem>>, vector<256x128xbf16>
    %cst_8 = arith.constant dense<0.000000e+00> : vector<16x128xf32>
    %10 = tpu.matmul %8, %9, %cst_8 {dimension_numbers = #tpu.dot_dimension_numbers<[1], [0], [0], [1], [0, 0, 1, 1], [], []>} : vector<16x256xbf16>, vector<256x128xbf16>, vector<16x128xf32> -> vector<16x128xf32>
    %c0_9 = arith.constant 0 : index
    %c0_10 = arith.constant 0 : index
    %11 = vector.load %arg5[%c0_9, %c0_10] : memref<1x128xf32, #tpu.memory_space<vmem>>, vector<1x128xf32>
    %12 = vector.broadcast %11 : vector<1x128xf32> to vector<16x128xf32>
    %13 = arith.addf %10, %12 : vector<16x128xf32>
    %cst_11 = arith.constant 0.000000e+00 : f32
    %14 = vector.broadcast %cst_11 : f32 to vector<16x128xf32>
    %15 = arith.maximumf %13, %14 : vector<16x128xf32>
    %16 = arith.truncf %15 : vector<16x128xf32> to vector<16x128xbf16>
    %c0_12 = arith.constant 0 : index
    %c0_13 = arith.constant 0 : index
    %17 = vector.load %arg6[%c0_12, %c0_13] : memref<128x64xbf16, #tpu.memory_space<vmem>>, vector<128x64xbf16>
    %cst_14 = arith.constant dense<0.000000e+00> : vector<16x64xf32>
    %18 = tpu.matmul %16, %17, %cst_14 {dimension_numbers = #tpu.dot_dimension_numbers<[1], [0], [0], [1], [0, 0, 1, 1], [], []>} : vector<16x128xbf16>, vector<128x64xbf16>, vector<16x64xf32> -> vector<16x64xf32>
    %c0_15 = arith.constant 0 : index
    %c0_16 = arith.constant 0 : index
    %19 = vector.load %arg7[%c0_15, %c0_16] : memref<1x64xf32, #tpu.memory_space<vmem>>, vector<1x64xf32>
    %20 = vector.broadcast %19 : vector<1x64xf32> to vector<16x64xf32>
    %21 = arith.addf %18, %20 : vector<16x64xf32>
    %cst_17 = arith.constant 0.000000e+00 : f32
    %22 = vector.broadcast %cst_17 : f32 to vector<16x64xf32>
    %23 = arith.maximumf %21, %22 : vector<16x64xf32>
    %24 = arith.truncf %23 : vector<16x64xf32> to vector<16x64xbf16>
    %c0_18 = arith.constant 0 : index
    %c0_19 = arith.constant 0 : index
    %25 = vector.load %arg8[%c0_18, %c0_19] : memref<64x128xbf16, #tpu.memory_space<vmem>>, vector<64x128xbf16>
    %cst_20 = arith.constant dense<0.000000e+00> : vector<16x128xf32>
    %26 = tpu.matmul %24, %25, %cst_20 {dimension_numbers = #tpu.dot_dimension_numbers<[1], [0], [0], [1], [0, 0, 1, 1], [], []>} : vector<16x64xbf16>, vector<64x128xbf16>, vector<16x128xf32> -> vector<16x128xf32>
    %c0_21 = arith.constant 0 : index
    %c0_22 = arith.constant 0 : index
    %27 = vector.load %arg9[%c0_21, %c0_22] : memref<1x128xf32, #tpu.memory_space<vmem>>, vector<1x128xf32>
    %28 = vector.broadcast %27 : vector<1x128xf32> to vector<16x128xf32>
    %29 = arith.addf %26, %28 : vector<16x128xf32>
    %30 = vector.extract_strided_slice %29 {offsets = [0, 4], sizes = [16, 1], strides = [1, 1]} : vector<16x128xf32> to vector<16x1xf32>
    %cst_23 = arith.constant dense<0.000000e+00> : vector<16xf32>
    %31 = vector.multi_reduction <add>, %29, %cst_23 [1] : vector<16x128xf32> to vector<16xf32>
    %32 = vector.shape_cast %31 : vector<16xf32> to vector<16x1xf32>
    %33 = arith.subf %32, %30 : vector<16x1xf32>
    %cst_24 = arith.constant 2.500000e-01 : f32
    %34 = vector.broadcast %cst_24 : f32 to vector<16x1xf32>
    %35 = arith.mulf %33, %34 : vector<16x1xf32>
    %36 = vector.extract_strided_slice %29 {offsets = [0, 0], sizes = [16, 4], strides = [1, 1]} : vector<16x128xf32> to vector<16x4xf32>
    %37 = vector.broadcast %30 : vector<16x1xf32> to vector<16x4xf32>
    %38 = arith.addf %37, %36 : vector<16x4xf32>
    %39 = vector.broadcast %35 : vector<16x1xf32> to vector<16x4xf32>
    %40 = arith.subf %38, %39 : vector<16x4xf32>
    %c0_25 = arith.constant 0 : index
    %c0_26 = arith.constant 0 : index
    %41 = vector.load %arg10[%c0_25, %c0_26] : memref<16x4xf32, #tpu.memory_space<vmem>>, vector<16x4xf32>
    tpu.vector_store %arg10[%c0_25, %c0_26], %40 {strides = array<i32>} : memref<16x4xf32, #tpu.memory_space<vmem>>, vector<16x4xf32>,
    return
  }
  func.func @transform_0(%arg0: i32) -> (i32, i32) {
    %c0_i32 = arith.constant 0 : i32
    %c0_i32_0 = arith.constant 0 : i32
    return %arg0, %c0_i32 : i32, i32
  }
  func.func @transform_1(%arg0: i32) -> (i32, i32) {
    %c0_i32 = arith.constant 0 : i32
    %c0_i32_0 = arith.constant 0 : i32
    %c0_i32_1 = arith.constant 0 : i32
    return %c0_i32, %c0_i32_0 : i32, i32
  }
  func.func @transform_2(%arg0: i32) -> (i32, i32) {
    %c0_i32 = arith.constant 0 : i32
    %c0_i32_0 = arith.constant 0 : i32
    %c0_i32_1 = arith.constant 0 : i32
    return %c0_i32, %c0_i32_0 : i32, i32
  }
  func.func @transform_3(%arg0: i32) -> (i32, i32) {
    %c0_i32 = arith.constant 0 : i32
    %c0_i32_0 = arith.constant 0 : i32
    %c0_i32_1 = arith.constant 0 : i32
    return %c0_i32, %c0_i32_0 : i32, i32
  }
  func.func @transform_4(%arg0: i32) -> (i32, i32) {
    %c0_i32 = arith.constant 0 : i32
    %c0_i32_0 = arith.constant 0 : i32
    %c0_i32_1 = arith.constant 0 : i32
    return %c0_i32, %c0_i32_0 : i32, i32
  }
  func.func @transform_5(%arg0: i32) -> (i32, i32) {
    %c0_i32 = arith.constant 0 : i32
    %c0_i32_0 = arith.constant 0 : i32
    %c0_i32_1 = arith.constant 0 : i32
    return %c0_i32, %c0_i32_0 : i32, i32
  }
  func.func @transform_6(%arg0: i32) -> (i32, i32) {
    %c0_i32 = arith.constant 0 : i32
    %c0_i32_0 = arith.constant 0 : i32
    %c0_i32_1 = arith.constant 0 : i32
    return %c0_i32, %c0_i32_0 : i32, i32
  }
  func.func @transform_7(%arg0: i32) -> (i32, i32) {
    %c0_i32 = arith.constant 0 : i32
    %c0_i32_0 = arith.constant 0 : i32
    %c0_i32_1 = arith.constant 0 : i32
    return %c0_i32, %c0_i32_0 : i32, i32
  }
  func.func @transform_8(%arg0: i32) -> (i32, i32) {
    %c0_i32 = arith.constant 0 : i32
    %c0_i32_0 = arith.constant 0 : i32
    %c0_i32_1 = arith.constant 0 : i32
    return %c0_i32, %c0_i32_0 : i32, i32
  }
  func.func @transform_9(%arg0: i32) -> (i32, i32) {
    %c0_i32 = arith.constant 0 : i32
    %c0_i32_0 = arith.constant 0 : i32
    return %arg0, %c0_i32 : i32, i32
  }
}

</mosaic_0001>

<llo_original>
// kernel: dueling_q_forward.1
$region0: #{dueling_q_forward.1}
  #allocation0 [shape = 'u32[]', space=smem, size = 0x4, offset = 0x4, fixed_abs, tag = 'smem constant byte address 0x4 - core index']
  #allocation1 [shape = 'u32[72,128]{1,0:T(1,128)}', space=vmem, size = 0x9000, scoped, tag = 'internal scratch']
  %s0 = inlined_call_operand.vmem [shape: bf16[16,8], index: 0, kind: input, shape index: {}]
  %s1 = inlined_call_operand.vmem [shape: bf16[8,256], index: 1, kind: input, shape index: {}]
  %s2 = inlined_call_operand.vmem [shape: f32[1,256], index: 2, kind: input, shape index: {}]
  %s3 = inlined_call_operand.hbm [shape: bf16[256,128], index: 3, kind: input, shape index: {}]
  %s4 = inlined_call_operand.vmem [shape: f32[1,128], index: 4, kind: input, shape index: {}]
  %s5 = inlined_call_operand.vmem [shape: bf16[128,64], index: 5, kind: input, shape index: {}]
  %s6 = inlined_call_operand.vmem [shape: f32[1,64], index: 6, kind: input, shape index: {}]
  %s7 = inlined_call_operand.vmem [shape: bf16[64,128], index: 7, kind: input, shape index: {}]
  %s8 = inlined_call_operand.vmem [shape: f32[1,128], index: 8, kind: input, shape index: {}]
  %s9 = inlined_call_operand.vmem [shape: f32[16,4], index: 9, kind: output, shape index: {}]
  %s10 = sld [smem:[#allocation0]]
  $region50: #{dueling_q_forward.1} parent=0
    _
  %s12 = ssub.s32 1, %s10
  %s13 = scalar_select 0, %s12, %s10
  $region1: #{dueling_q_forward.1} parent=0
    #allocation2 [shape = 'u8[65536]{0}', space=vmem, size = 0x10000, scoped, tag = 'input window, operand 3, single buffered']
    #allocation3 [shape = 's32[1]{0}', space=sflag, size = 0x4, scoped, tag = 'scoped memory for dueling_q_forward.1']
    %14 = vsyncpa [#allocation3], 0
    // Predicated region
    $region2: #{dueling_q_forward.1} parent=1 // pred_check
      _
    $region3: #{dueling_q_forward.1} parent=1 // pred_check_branch
      %16 = sbr.rel (0) target = $region5
    $region4: #{dueling_q_forward.1} parent=1 // pred_region
      _
    $region5: #{dueling_q_forward.1} parent=1 // pred_fallthru
      _
    // Predicated region
    $region6: #{dueling_q_forward.1} parent=1 // pred_check
      _
    $region7: #{dueling_q_forward.1} parent=1 // pred_check_branch
      %18 = sbr.rel (0) target = $region9
    $region8: #{dueling_q_forward.1} parent=1 // pred_region
      _
    $region9: #{dueling_q_forward.1} parent=1 // pred_fallthru
      _
    // Predicated region
    $region10: #{dueling_q_forward.1} parent=1 // pred_check
      _
    $region11: #{dueling_q_forward.1} parent=1 // pred_check_branch
      %20 = sbr.rel (0) target = $region13
    $region12: #{dueling_q_forward.1} parent=1 // pred_region
      _
    $region13: #{dueling_q_forward.1} parent=1 // pred_fallthru
      _
    // Predicated region
    $region14: #{dueling_q_forward.1} parent=1 // pred_check
      _
    $region15: #{dueling_q_forward.1} parent=1 // pred_check_branch
      %22 = sbr.rel (0) target = $region17
    $region16: #{dueling_q_forward.1} parent=1 // pred_region
      %24 = vsyncadd [#allocation3], 0
      %s25 = sshll.u32 %s3, 4
      %s26 = int_to_ptr.hbm [resolvable:$true] %s25
      %s27 = sshll.u32 [#allocation2], 4
      %s28 = int_to_ptr.vmem [resolvable:$true] %s27
      %33 = dma.hbm_to_vmem [thread:$0]  %s26, 2048, %s28, [#allocation3], 64, 64, 4
    $region17: #{dueling_q_forward.1} parent=1 // pred_fallthru
      _
    // Predicated region
    $region18: #{dueling_q_forward.1} parent=1 // pred_check
      _
    $region19: #{dueling_q_forward.1} parent=1 // pred_check_branch
      %35 = sbr.rel (0) target = $region21
    $region20: #{dueling_q_forward.1} parent=1 // pred_region
      _
    $region21: #{dueling_q_forward.1} parent=1 // pred_fallthru
      _
    // Predicated region
    $region22: #{dueling_q_forward.1} parent=1 // pred_check
      _
    $region23: #{dueling_q_forward.1} parent=1 // pred_check_branch
      %37 = sbr.rel (0) target = $region25
    $region24: #{dueling_q_forward.1} parent=1 // pred_region
      _
    $region25: #{dueling_q_forward.1} parent=1 // pred_fallthru
      _
    // Predicated region
    $region26: #{dueling_q_forward.1} parent=1 // pred_check
      _
    $region27: #{dueling_q_forward.1} parent=1 // pred_check_branch
      %39 = sbr.rel (0) target = $region29
    $region28: #{dueling_q_forward.1} parent=1 // pred_region
      _
    $region29: #{dueling_q_forward.1} parent=1 // pred_fallthru
      _
    // Predicated region
    $region30: #{dueling_q_forward.1} parent=1 // pred_check
      _
    $region31: #{dueling_q_forward.1} parent=1 // pred_check_branch
      %41 = sbr.rel (0) target = $region33
    $region32: #{dueling_q_forward.1} parent=1 // pred_region
      _
    $region33: #{dueling_q_forward.1} parent=1 // pred_fallthru
      _
    // Predicated region
    $region34: #{dueling_q_forward.1} parent=1 // pred_check
      _
    $region35: #{dueling_q_forward.1} parent=1 // pred_check_branch
      %43 = sbr.rel (0) target = $region37
    $region36: #{dueling_q_forward.1} parent=1 // pred_region
      _
    $region37: #{dueling_q_forward.1} parent=1 // pred_fallthru
      _
    // Predicated region
    $region38: #{dueling_q_forward.1} parent=1 // pred_check
      _
    $region39: #{dueling_q_forward.1} parent=1 // pred_check_branch
      %45 = sbr.rel (0) target = $region41
    $region40: #{dueling_q_forward.1} parent=1 // pred_region
      %47 = dma.done [#allocation3], 2048
    $region41: #{dueling_q_forward.1} parent=1 // pred_fallthru
      _
    %v49 = vld [vmem:[%s0] sm:$0xf]
    %v50 = vld [vmem:[%s0 + $0x4] sm:$0xf]
    %v51 = vld [vmem:[%s1] sm:$0xff]
    %v52 = vld [vmem:[%s2] sm:$0x3]
    %v54 = vperm.slane %v52, 0
    %v55 = vperm.slane %v52, 1
    %v60 = vunpack.c.l.b16 %v49
    %v61 = vunpack.c.l.b16 %v50
    %v62 = vpack.c.b16 %v61, %v60
    %v64 = vunpack.c.l.b16 %v51
    %v65 = vunpack.c.h.b16 %v51
    %v66 = vpack.c.b16 %v64, %v64
    %v67 = vpack.c.b16 %v65, %v65
    %vm68 = vcmask 64512
    %v70 = vsel %vm68, %v62, 0
    %vm72 = vcmask 1043456
    %v74 = vsel %vm72, %v66, 0
    %v77 = vsel %vm72, %v67, 0
    %79 = vmatpush.bf16.msra.mxu0 0
    %80 = vmatpush.bf16.msra.mxu0 0
    %81 = vmatpush.bf16.msra.mxu0 0
    %82 = vmatpush.bf16.msra.mxu0 0
    %83 = vmatpush.bf16.msra.mxu0 0
    %84 = vmatpush.bf16.msra.mxu0 0
    %85 = vmatpush.bf16.msra.mxu0 0
    %86 = vmatpush.bf16.msra.mxu0 %v74
    %87 = vmatmul.bf16.gmra.mxu0 %v70
    %v88 = vpop.f32.mrf.mxu0
    %v89 = vadd.f32 %v54, %v88
    %v90 = vpop.f32.mrf.mxu0
    %v91 = vadd.f32 %v54, %v90
    %92 = vdwg.mxu0
    %93 = vmatpush.bf16.msra.mxu0 0
    %94 = vmatpush.bf16.msra.mxu0 0
    %95 = vmatpush.bf16.msra.mxu0 0
    %96 = vmatpush.bf16.msra.mxu0 0
    %97 = vmatpush.bf16.msra.mxu0 0
    %98 = vmatpush.bf16.msra.mxu0 0
    %99 = vmatpush.bf16.msra.mxu0 0
    %100 = vmatpush.bf16.msra.mxu0 %v77
    %101 = vmatmul.bf16.gmra.mxu0 %v70
    %v102 = vpop.f32.mrf.mxu0
    %v103 = vadd.f32 %v55, %v102
    %v104 = vpop.f32.mrf.mxu0
    %v105 = vadd.f32 %v55, %v104
    %106 = vdwg.mxu0
    %v107 = vmax.f32 %v89, 0.0
    %v108 = vmax.f32 %v103, 0.0
    %v109 = vmax.f32 %v91, 0.0
    %v110 = vmax.f32 %v105, 0.0
    %v111 = vpack.c.bf16 %v109, %v107
    %v112 = vpack.c.bf16 %v110, %v108
    %v113 = vld [vmem:[#allocation2] sm:$0xf]
    %v114 = vld [vmem:[#allocation2 + $0x4] sm:$0xf]
    %v115 = vld [vmem:[#allocation2 + $0x8] sm:$0xf]
    %v116 = vld [vmem:[#allocation2 + $0xc] sm:$0xf]
    %v117 = vld [vmem:[#allocation2 + $0x10] sm:$0xf]
    %v118 = vld [vmem:[#allocation2 + $0x14] sm:$0xf]
    %v119 = vld [vmem:[#allocation2 + $0x18] sm:$0xf]
    %v120 = vld [vmem:[#allocation2 + $0x1c] sm:$0xf]
    %v121 = vld [vmem:[#allocation2 + $0x20] sm:$0xf]
    %v122 = vld [vmem:[#allocation2 + $0x24] sm:$0xf]
    %v123 = vld [vmem:[#allocation2 + $0x28] sm:$0xf]
    %v124 = vld [vmem:[#allocation2 + $0x2c] sm:$0xf]
    %v125 = vld [vmem:[#allocation2 + $0x30] sm:$0xf]
    %v126 = vld [vmem:[#allocation2 + $0x34] sm:$0xf]
    %v127 = vld [vmem:[#allocation2 + $0x38] sm:$0xf]
    %v128 = vld [vmem:[#allocation2 + $0x3c] sm:$0xf]
    %v129 = vld [vmem:[#allocation2 + $0x40] sm:$0xf]
    %v130 = vld [vmem:[#allocation2 + $0x44] sm:$0xf]
    %v131 = vld [vmem:[#allocation2 + $0x48] sm:$0xf]
    %v132 = vld [vmem:[#allocation2 + $0x4c] sm:$0xf]
    %v133 = vld [vmem:[#allocation2 + $0x50] sm:$0xf]
    %v134 = vld [vmem:[#allocation2 + $0x54] sm:$0xf]
    %v135 = vld [vmem:[#allocation2 + $0x58] sm:$0xf]
    %v136 = vld [vmem:[#allocation2 + $0x5c] sm:$0xf]
    %v137 = vld [vmem:[#allocation2 + $0x60] sm:$0xf]
    %v138 = vld [vmem:[#allocation2 + $0x64] sm:$0xf]
    %v139 = vld [vmem:[#allocation2 + $0x68] sm:$0xf]
    %v140 = vld [vmem:[#allocation2 + $0x6c] sm:$0xf]
    %v141 = vld [vmem:[#allocation2 + $0x70] sm:$0xf]
    %v142 = vld [vmem:[#allocation2 + $0x74] sm:$0xf]
    %v143 = vld [vmem:[#allocation2 + $0x78] sm:$0xf]
    %v144 = vld [vmem:[#allocation2 + $0x7c] sm:$0xf]
    %v145 = vld [vmem:[%s4] sm:$0x1]
    %v147 = vperm.slane %v145, 0
    %v181 = vunpack.c.l.b16 %v113
    %v182 = vunpack.c.l.b16 %v114
    %v183 = vunpack.c.l.b16 %v115
    %v184 = vunpack.c.l.b16 %v116
    %v185 = vunpack.c.l.b16 %v117
    %v186 = vunpack.c.l.b16 %v118
    %v187 = vunpack.c.l.b16 %v119
    %v188 = vunpack.c.l.b16 %v120
    %v189 = vunpack.c.l.b16 %v121
    %v190 = vunpack.c.l.b16 %v122
    %v191 = vunpack.c.l.b16 %v123
    %v192 = vunpack.c.l.b16 %v124
    %v193 = vunpack.c.l.b16 %v125
    %v194 = vunpack.c.l.b16 %v126
    %v195 = vunpack.c.l.b16 %v127
    %v196 = vunpack.c.l.b16 %v128
    %v197 = vunpack.c.l.b16 %v129
    %v198 = vunpack.c.l.b16 %v130
    %v199 = vunpack.c.l.b16 %v131
    %v200 = vunpack.c.l.b16 %v132
    %v201 = vunpack.c.l.b16 %v133
    %v202 = vunpack.c.l.b16 %v134
    %v203 = vunpack.c.l.b16 %v135
    %v204 = vunpack.c.l.b16 %v136
    %v205 = vunpack.c.l.b16 %v137
    %v206 = vunpack.c.l.b16 %v138
    %v207 = vunpack.c.l.b16 %v139
    %v208 = vunpack.c.l.b16 %v140
    %v209 = vunpack.c.l.b16 %v141
    %v210 = vunpack.c.l.b16 %v142
    %v211 = vunpack.c.l.b16 %v143
    %v212 = vunpack.c.l.b16 %v144
    %v213 = vpack.c.b16 %v182, %v181
    %v214 = vpack.c.b16 %v184, %v183
    %v215 = vpack.c.b16 %v186, %v185
    %v216 = vpack.c.b16 %v188, %v187
    %v217 = vpack.c.b16 %v190, %v189
    %v218 = vpack.c.b16 %v192, %v191
    %v219 = vpack.c.b16 %v194, %v193
    %v220 = vpack.c.b16 %v196, %v195
    %v221 = vpack.c.b16 %v198, %v197
    %v222 = vpack.c.b16 %v200, %v199
    %v223 = vpack.c.b16 %v202, %v201
    %v224 = vpack.c.b16 %v204, %v203
    %v225 = vpack.c.b16 %v206, %v205
    %v226 = vpack.c.b16 %v208, %v207
    %v227 = vpack.c.b16 %v210, %v209
    %v228 = vpack.c.b16 %v212, %v211
    %245 = vmatpush.bf16.msra.mxu0 %v220
    %246 = vmatpush.bf16.msra.mxu0 %v219
    %247 = vmatpush.bf16.msra.mxu0 %v218
    %248 = vmatpush.bf16.msra.mxu0 %v217
    %249 = vmatpush.bf16.msra.mxu0 %v216
    %250 = vmatpush.bf16.msra.mxu0 %v215
    %251 = vmatpush.bf16.msra.mxu0 %v214
    %252 = vmatpush.bf16.msra.mxu0 %v213
    %253 = vmatmul.bf16.gmra.mxu0 %v111
    %v254 = vpop.f32.mrf.mxu0
    %v255 = vadd.f32 %v147, %v254
    %v256 = vpop.f32.mrf.mxu0
    %v257 = vadd.f32 %v147, %v256
    %258 = vdwg.mxu0
    %259 = vmatpush.bf16.msra.mxu0 %v228
    %260 = vmatpush.bf16.msra.mxu0 %v227
    %261 = vmatpush.bf16.msra.mxu0 %v226
    %262 = vmatpush.bf16.msra.mxu0 %v225
    %263 = vmatpush.bf16.msra.mxu0 %v224
    %264 = vmatpush.bf16.msra.mxu0 %v223
    %265 = vmatpush.bf16.msra.mxu0 %v222
    %266 = vmatpush.bf16.msra.mxu0 %v221
    %267 = vmatmul.bf16.gmra.mxu0 %v112
    %v268 = vpop.f32.mrf.mxu0
    %v269 = vadd.f32 %v255, %v268
    %v270 = vpop.f32.mrf.mxu0
    %v271 = vadd.f32 %v257, %v270
    %272 = vdwg.mxu0
    %v273 = vmax.f32 %v269, 0.0
    %v274 = vmax.f32 %v271, 0.0
    %v275 = vpack.c.bf16 %v274, %v273
    %v276 = vld [vmem:[%s5] sm:$0xf]
    %v277 = vld [vmem:[%s5 + $0x4] sm:$0xf]
    %v278 = vld [vmem:[%s5 + $0x8] sm:$0xf]
    %v279 = vld [vmem:[%s5 + $0xc] sm:$0xf]
    %v280 = vld [vmem:[%s5 + $0x10] sm:$0xf]
    %v281 = vld [vmem:[%s5 + $0x14] sm:$0xf]
    %v282 = vld [vmem:[%s5 + $0x18] sm:$0xf]
    %v283 = vld [vmem:[%s5 + $0x1c] sm:$0xf]
    %v284 = vld [vmem:[%s5 + $0x20] sm:$0xf]
    %v285 = vld [vmem:[%s5 + $0x24] sm:$0xf]
    %v286 = vld [vmem:[%s5 + $0x28] sm:$0xf]
    %v287 = vld [vmem:[%s5 + $0x2c] sm:$0xf]
    %v288 = vld [vmem:[%s5 + $0x30] sm:$0xf]
    %v289 = vld [vmem:[%s5 + $0x34] sm:$0xf]
    %v290 = vld [vmem:[%s5 + $0x38] sm:$0xf]
    %v291 = vld [vmem:[%s5 + $0x3c] sm:$0xf]
    %v292 = vld [vmem:[%s6] sm:$0x1]
    %v294 = vperm.slane %v292, 0
    %v312 = vunpack.c.l.b16 %v276
    %v313 = vunpack.c.l.b16 %v277
    %v314 = vunpack.c.l.b16 %v278
    %v315 = vunpack.c.l.b16 %v279
    %v316 = vunpack.c.l.b16 %v280
    %v317 = vunpack.c.l.b16 %v281
    %v318 = vunpack.c.l.b16 %v282
    %v319 = vunpack.c.l.b16 %v283
    %v320 = vunpack.c.l.b16 %v284
    %v321 = vunpack.c.l.b16 %v285
    %v322 = vunpack.c.l.b16 %v286
    %v323 = vunpack.c.l.b16 %v287
    %v324 = vunpack.c.l.b16 %v288
    %v325 = vunpack.c.l.b16 %v289
    %v326 = vunpack.c.l.b16 %v290
    %v327 = vunpack.c.l.b16 %v291
    %v328 = vpack.c.b16 %v313, %v312
    %v329 = vpack.c.b16 %v315, %v314
    %v330 = vpack.c.b16 %v317, %v316
    %v331 = vpack.c.b16 %v319, %v318
    %v332 = vpack.c.b16 %v321, %v320
    %v333 = vpack.c.b16 %v323, %v322
    %v334 = vpack.c.b16 %v325, %v324
    %v335 = vpack.c.b16 %v327, %v326
    %344 = vmatpush.bf16.msra.mxu0 %v335
    %345 = vmatpush.bf16.msra.mxu0 %v334
    %346 = vmatpush.bf16.msra.mxu0 %v333
    %347 = vmatpush.bf16.msra.mxu0 %v332
    %348 = vmatpush.bf16.msra.mxu0 %v331
    %349 = vmatpush.bf16.msra.mxu0 %v330
    %350 = vmatpush.bf16.msra.mxu0 %v329
    %351 = vmatpush.bf16.msra.mxu0 %v328
    %352 = vmatmul.bf16.gmra.mxu0 %v275
    %v353 = vpop.f32.mrf.mxu0
    %v354 = vadd.f32 %v294, %v353
    %v355 = vpop.f32.mrf.mxu0
    %v356 = vadd.f32 %v294, %v355
    %357 = vdwg.mxu0
    %v358 = vmax.f32 %v354, 0.0
    %v359 = vmax.f32 %v356, 0.0
    %v360 = vpack.c.bf16 %v359, %v358
    %v361 = vld [vmem:[%s7] sm:$0xf]
    %v362 = vld [vmem:[%s7 + $0x4] sm:$0xf]
    %v363 = vld [vmem:[%s7 + $0x8] sm:$0xf]
    %v364 = vld [vmem:[%s7 + $0xc] sm:$0xf]
    %v365 = vld [vmem:[%s7 + $0x10] sm:$0xf]
    %v366 = vld [vmem:[%s7 + $0x14] sm:$0xf]
    %v367 = vld [vmem:[%s7 + $0x18] sm:$0xf]
    %v368 = vld [vmem:[%s7 + $0x1c] sm:$0xf]
    %v369 = vld [vmem:[%s8] sm:$0x1]
    %v371 = vperm.slane %v369, 0
    %v381 = vunpack.c.l.b16 %v361
    %v382 = vunpack.c.l.b16 %v362
    %v383 = vunpack.c.l.b16 %v363
    %v384 = vunpack.c.l.b16 %v364
    %v385 = vunpack.c.l.b16 %v365
    %v386 = vunpack.c.l.b16 %v366
    %v387 = vunpack.c.l.b16 %v367
    %v388 = vunpack.c.l.b16 %v368
    %v389 = vpack.c.b16 %v382, %v381
    %v390 = vpack.c.b16 %v384, %v383
    %v391 = vpack.c.b16 %v386, %v385
    %v392 = vpack.c.b16 %v388, %v387
    %vm397 = vcmask 523264
    %v399 = vsel %vm397, %v360, 0
    %401 = vmatpush.bf16.msra.mxu0 0
    %402 = vmatpush.bf16.msra.mxu0 0
    %403 = vmatpush.bf16.msra.mxu0 0
    %404 = vmatpush.bf16.msra.mxu0 0
    %405 = vmatpush.bf16.msra.mxu0 %v392
    %406 = vmatpush.bf16.msra.mxu0 %v391
    %407 = vmatpush.bf16.msra.mxu0 %v390
    %408 = vmatpush.bf16.msra.mxu0 %v389
    %409 = vmatmul.bf16.gmra.mxu0 %v399
    %v410 = vpop.f32.mrf.mxu0
    %v411 = vadd.f32 %v371, %v410
    %v412 = vpop.f32.mrf.mxu0
    %v413 = vadd.f32 %v371, %v412
    %414 = vdwg.mxu0
    %415 = vadd.xlane.f32.xlu0 %v411
    %v416 = vpop.xlane.xlu0 %415
    %417 = vadd.xlane.f32.xlu0 %v413
    %v418 = vpop.xlane.xlu0 %417
    %v419 = vsub.f32 %v416, %v411
    %v420 = vsub.f32 %v418, %v413
    %v421 = vmul.f32 %v419, 0.25
    %v422 = vmul.f32 %v420, 0.25
    %424 = vset.pattern.permute.xlu0 4
    %425 = vperm.xlu0 %424, %v411
    %v426 = vpop.permute.xlu0 %425
    %429 = vset.pattern.permute.xlu0 4
    %430 = vperm.xlu0 %429, %v413
    %v431 = vpop.permute.xlu0 %430
    %v433 = vadd.f32 %v426, %v411
    %v434 = vadd.f32 %v431, %v413
    %436 = vset.pattern.permute.xlu0 4
    %437 = vperm.xlu0 %436, %v421
    %v438 = vpop.permute.xlu0 %437
    %441 = vset.pattern.permute.xlu0 4
    %442 = vperm.xlu0 %441, %v422
    %v443 = vpop.permute.xlu0 %442
    %v445 = vsub.f32 %v433, %v438
    %v446 = vsub.f32 %v434, %v443
    %vm447 = vcmask 31744
    %448 = vst.msk [vmem:[%s9] sm:$0xff] %vm447, %v445
    %449 = vst.msk [vmem:[%s9 + $0x8] sm:$0xff] %vm447, %v446
    // Predicated region
    $region42: #{dueling_q_forward.1} parent=1 // pred_check
      _
    $region43: #{dueling_q_forward.1} parent=1 // pred_check_branch
      %451 = sbr.rel (0) target = $region45
    $region44: #{dueling_q_forward.1} parent=1 // pred_region
      _
    $region45: #{dueling_q_forward.1} parent=1 // pred_fallthru
      _
    // Predicated region
    $region46: #{dueling_q_forward.1} parent=1 // pred_check
      _
    $region47: #{dueling_q_forward.1} parent=1 // pred_check_branch
      %453 = sbr.rel (0) target = $region49
    $region48: #{dueling_q_forward.1} parent=1 // pred_region
      _
    $region49: #{dueling_q_forward.1} parent=1 // pred_fallthru
      _
    %454 = vsyncpa [#allocation3], 1

</llo_original>
